<compile_context>
chip_gen: v5e
topology: v5e:2x2
jax: 0.10.0
libtpu: 0.0.40
codegen_flags: <defaults>
</compile_context>

<pallas_src>
import jax
import jax.numpy as jnp
from jax.experimental import pallas as pl
from jax.experimental.pallas import tpu as pltpu


def _mlp_kernel(x_ref, w1_ref, b1_ref, w2_ref, b2_ref, o_ref):
    """Fused 2-layer MLP: (x @ W1 + b1) -> LeakyReLU(0.01) -> (@ W2 + b2)."""
    x = x_ref[...]                                                    # [tm, F]
    h = jnp.dot(x, w1_ref[...],
                preferred_element_type=jnp.float32,
                precision=jax.lax.Precision.HIGHEST) + b1_ref[...]    # [tm, F]
    h = jnp.where(h > 0, h, 0.01 * h)                                 # LeakyReLU(0.01)
    o = jnp.dot(h, w2_ref[...],
                preferred_element_type=jnp.float32,
                precision=jax.lax.Precision.HIGHEST) + b2_ref[...]    # [tm, L]
    o_ref[...] = o.astype(o_ref.dtype)


def _mlp_pallas(x2d, w1, b1, w2, b2, *, max_tile_m=2048):
    """Run one 2-layer MLP over x2d [rows, F] -> [rows, L] in a single pallas_call."""
    rows, F = x2d.shape
    L = w2.shape[1]

    if rows <= max_tile_m:
        # Single block covering the full row extent (block dim == full array
        # dim is always legal, no divisibility requirement, no padding).
        tile_m = rows
    else:
        # Multiple-of-8 tile; the trailing partial tile is masked by Pallas.
        tile_m = max(8, (max_tile_m // 8) * 8)
    grid_m = pl.cdiv(rows, tile_m)

    return pl.pallas_call(
        _mlp_kernel,
        out_shape=jax.ShapeDtypeStruct((rows, L), x2d.dtype),
        grid_spec=pltpu.PrefetchScalarGridSpec(
            num_scalar_prefetch=0,
            grid=(grid_m,),                                       # row tiles only
            in_specs=[
                pl.BlockSpec((tile_m, F), lambda i: (i, 0)),      # x tile
                pl.BlockSpec((F, F), lambda i: (0, 0)),           # W1 (resident)
                pl.BlockSpec((1, F), lambda i: (0, 0)),           # b1 (resident)
                pl.BlockSpec((F, L), lambda i: (0, 0)),           # W2 (resident)
                pl.BlockSpec((1, L), lambda i: (0, 0)),           # b2 (resident)
            ],
            out_specs=pl.BlockSpec((tile_m, L), lambda i: (i, 0)),  # true-L output
        ),
        compiler_params=pltpu.CompilerParams(
            dimension_semantics=("parallel",)),                   # megacore on v7x
    )(x2d, w1, b1, w2, b2)


@jax.jit
def relation_type_inference(e_CG, e_HG, params):
    """Forward of RelationTypeInference: returns (edge_logits, hyperedge_logits).

    NOTE: the reference forward() returns raw logits; Gumbel-Softmax with tau is
    described in the docstring but never applied in forward, so neither do we.
    """
    (ew1, eb1, ew2, eb2), (hw1, hb1, hw2, hb2) = params
    B, E, Fe = e_CG.shape
    _, M, Fh = e_HG.shape

    # [B, N, F] -> [B*N, F] is layout-preserving (free); no pad/stack copy.
    z_CG = _mlp_pallas(e_CG.reshape(B * E, Fe), ew1, eb1, ew2, eb2)
    z_HG = _mlp_pallas(e_HG.reshape(B * M, Fh), hw1, hb1, hw2, hb2)
    return z_CG.reshape(B, E, -1), z_HG.reshape(B, M, -1)


def init_linear(key, fan_in, fan_out):
    """PyTorch-style nn.Linear init (uniform +-1/sqrt(fan_in)), stored as [in, out]."""
    k_w, k_b = jax.random.split(key)
    bound = 1.0 / jnp.sqrt(fan_in)
    w = jax.random.uniform(k_w, (fan_in, fan_out), jnp.float32, -bound, bound)
    b = jax.random.uniform(k_b, (1, fan_out), jnp.float32, -bound, bound)
    return w, b


if __name__ == "__main__":
    # Small, forward-consistent shapes.
    B = 2                     # batch
    E = 8                     # number of edges
    M = 8                     # number of hyperedges
    edge_input_dim = 32       # F for e_CG
    hyperedge_input_dim = 32  # F for e_HG
    num_edge_types = 8        # L_CG
    num_hyperedge_types = 8   # L_HG

    key = jax.random.PRNGKey(0)
    k_ecg, k_ehg, k_e1, k_e2, k_h1, k_h2 = jax.random.split(key, 6)

    e_CG = jax.random.normal(k_ecg, (B, E, edge_input_dim), jnp.float32)
    e_HG = jax.random.normal(k_ehg, (B, M, hyperedge_input_dim), jnp.float32)

    # edge_mlp: Linear(F,F) -> LeakyReLU -> Linear(F, L_CG)
    ew1, eb1 = init_linear(k_e1, edge_input_dim, edge_input_dim)
    ew2, eb2 = init_linear(k_e2, edge_input_dim, num_edge_types)
    # hyperedge_mlp: Linear(F,F) -> LeakyReLU -> Linear(F, L_HG)
    hw1, hb1 = init_linear(k_h1, hyperedge_input_dim, hyperedge_input_dim)
    hw2, hb2 = init_linear(k_h2, hyperedge_input_dim, num_hyperedge_types)

    params = ((ew1, eb1, ew2, eb2), (hw1, hb1, hw2, hb2))

    z_CG, z_HG = relation_type_inference(e_CG, e_HG, params)
    jax.block_until_ready((z_CG, z_HG))

    # Pure-JAX reference check (f32 math with HIGHEST precision, matching the
    # f32 PyTorch module).
    def ref_mlp(x, w1, b1, w2, b2):
        h = jnp.dot(x, w1, precision=jax.lax.Precision.HIGHEST) + b1[0]
        h = jnp.where(h > 0, h, 0.01 * h)
        return jnp.dot(h, w2, precision=jax.lax.Precision.HIGHEST) + b2[0]

    ref_cg = ref_mlp(e_CG, ew1, eb1, ew2, eb2)
    ref_hg = ref_mlp(e_HG, hw1, hb1, hw2, hb2)
    assert z_CG.shape == (B, E, num_edge_types)
    assert z_HG.shape == (B, M, num_hyperedge_types)
    assert jnp.allclose(z_CG, ref_cg, atol=1e-5)
    assert jnp.allclose(z_HG, ref_hg, atol=1e-5)

    print("KERNEL_OK")
</pallas_src>

<mosaic_0001>
module attributes {stable_mosaic.version = 11 : i64} {
  func.func @_mlp_kernel(%arg0: i32, %arg1: memref<16x32xf32, #tpu.memory_space<vmem>>, %arg2: memref<32x32xf32, #tpu.memory_space<vmem>>, %arg3: memref<1x32xf32, #tpu.memory_space<vmem>>, %arg4: memref<32x8xf32, #tpu.memory_space<vmem>>, %arg5: memref<1x8xf32, #tpu.memory_space<vmem>>, %arg6: memref<16x8xf32, #tpu.memory_space<vmem>>) attributes {dimension_semantics = [#tpu.dimension_semantics<parallel>], iteration_bounds = array<i64: 1>, scalar_prefetch = 0 : i64, scratch_operands = 0 : i64, tpu.core_type = #tpu.core_type<tc>, window_params = [{transform_indices = @transform_0, window_bounds = array<i64: 16, 32>}, {pipeline_mode = #tpu.pipeline_mode<synchronous>, transform_indices = @transform_1, window_bounds = array<i64: 32, 32>}, {pipeline_mode = #tpu.pipeline_mode<synchronous>, transform_indices = @transform_2, window_bounds = array<i64: 1, 32>}, {pipeline_mode = #tpu.pipeline_mode<synchronous>, transform_indices = @transform_3, window_bounds = array<i64: 32, 8>}, {pipeline_mode = #tpu.pipeline_mode<synchronous>, transform_indices = @transform_4, window_bounds = array<i64: 1, 8>}, {transform_indices = @transform_5, window_bounds = array<i64: 16, 8>}]} {
    %c0 = arith.constant 0 : index
    %c0_0 = arith.constant 0 : index
    %0 = vector.load %arg1[%c0, %c0_0] : memref<16x32xf32, #tpu.memory_space<vmem>>, vector<16x32xf32>
    %c0_1 = arith.constant 0 : index
    %c0_2 = arith.constant 0 : index
    %1 = vector.load %arg2[%c0_1, %c0_2] : memref<32x32xf32, #tpu.memory_space<vmem>>, vector<32x32xf32>
    %cst = arith.constant dense<0.000000e+00> : vector<16x32xf32>
    %2 = tpu.matmul %0, %1, %cst {dimension_numbers = #tpu.dot_dimension_numbers<[1], [0], [0], [1], [0, 0, 1, 1], [], []>, precision = #tpu.contract_precision<fp32>} : vector<16x32xf32>, vector<32x32xf32>, vector<16x32xf32> -> vector<16x32xf32>
    %c0_3 = arith.constant 0 : index
    %c0_4 = arith.constant 0 : index
    %3 = vector.load %arg3[%c0_3, %c0_4] : memref<1x32xf32, #tpu.memory_space<vmem>>, vector<1x32xf32>
    %4 = vector.broadcast %3 : vector<1x32xf32> to vector<16x32xf32>
    %5 = arith.addf %2, %4 : vector<16x32xf32>
    %cst_5 = arith.constant 0.000000e+00 : f32
    %6 = vector.broadcast %cst_5 : f32 to vector<16x32xf32>
    %7 = arith.cmpf ogt, %5, %6 : vector<16x32xf32>
    %cst_6 = arith.constant 0.00999999977 : f32
    %8 = vector.broadcast %cst_6 : f32 to vector<16x32xf32>
    %9 = arith.mulf %8, %5 : vector<16x32xf32>
    %10 = arith.select %7, %5, %9 : vector<16x32xi1>, vector<16x32xf32>
    %c0_7 = arith.constant 0 : index
    %c0_8 = arith.constant 0 : index
    %11 = vector.load %arg4[%c0_7, %c0_8] : memref<32x8xf32, #tpu.memory_space<vmem>>, vector<32x8xf32>
    %cst_9 = arith.constant dense<0.000000e+00> : vector<16x8xf32>
    %12 = tpu.matmul %10, %11, %cst_9 {dimension_numbers = #tpu.dot_dimension_numbers<[1], [0], [0], [1], [0, 0, 1, 1], [], []>, precision = #tpu.contract_precision<fp32>} : vector<16x32xf32>, vector<32x8xf32>, vector<16x8xf32> -> vector<16x8xf32>
    %c0_10 = arith.constant 0 : index
    %c0_11 = arith.constant 0 : index
    %13 = vector.load %arg5[%c0_10, %c0_11] : memref<1x8xf32, #tpu.memory_space<vmem>>, vector<1x8xf32>
    %14 = vector.broadcast %13 : vector<1x8xf32> to vector<16x8xf32>
    %15 = arith.addf %12, %14 : vector<16x8xf32>
    %c0_12 = arith.constant 0 : index
    %c0_13 = arith.constant 0 : index
    %16 = vector.load %arg6[%c0_12, %c0_13] : memref<16x8xf32, #tpu.memory_space<vmem>>, vector<16x8xf32>
    tpu.vector_store %arg6[%c0_12, %c0_13], %15 {strides = array<i32>} : memref<16x8xf32, #tpu.memory_space<vmem>>, vector<16x8xf32>,
    return
  }
  func.func @transform_0(%arg0: i32) -> (i32, i32) {
    %c0_i32 = arith.constant 0 : i32
    %c0_i32_0 = arith.constant 0 : i32
    return %arg0, %c0_i32 : i32, i32
  }
  func.func @transform_1(%arg0: i32) -> (i32, i32) {
    %c0_i32 = arith.constant 0 : i32
    %c0_i32_0 = arith.constant 0 : i32
    %c0_i32_1 = arith.constant 0 : i32
    return %c0_i32, %c0_i32_0 : i32, i32
  }
  func.func @transform_2(%arg0: i32) -> (i32, i32) {
    %c0_i32 = arith.constant 0 : i32
    %c0_i32_0 = arith.constant 0 : i32
    %c0_i32_1 = arith.constant 0 : i32
    return %c0_i32, %c0_i32_0 : i32, i32
  }
  func.func @transform_3(%arg0: i32) -> (i32, i32) {
    %c0_i32 = arith.constant 0 : i32
    %c0_i32_0 = arith.constant 0 : i32
    %c0_i32_1 = arith.constant 0 : i32
    return %c0_i32, %c0_i32_0 : i32, i32
  }
  func.func @transform_4(%arg0: i32) -> (i32, i32) {
    %c0_i32 = arith.constant 0 : i32
    %c0_i32_0 = arith.constant 0 : i32
    %c0_i32_1 = arith.constant 0 : i32
    return %c0_i32, %c0_i32_0 : i32, i32
  }
  func.func @transform_5(%arg0: i32) -> (i32, i32) {
    %c0_i32 = arith.constant 0 : i32
    %c0_i32_0 = arith.constant 0 : i32
    return %arg0, %c0_i32 : i32, i32
  }
}

</mosaic_0001>

<llo_original>
// kernel: relation_type_inference.2
$region0: #{relation_type_inference.2}
  #allocation0 [shape = 'u32[]', space=smem, size = 0x4, offset = 0x4, fixed_abs, tag = 'smem constant byte address 0x4 - core index']
  #allocation1 [shape = 'u32[72,128]{1,0:T(1,128)}', space=vmem, size = 0x9000, scoped, tag = 'internal scratch']
  %s0 = inlined_call_operand.hbm [shape: f32[16,32], index: 0, kind: input, shape index: {}]
  %s1 = inlined_call_operand.vmem [shape: f32[32,32], index: 1, kind: input, shape index: {}]
  %s2 = inlined_call_operand.vmem [shape: f32[1,32], index: 2, kind: input, shape index: {}]
  %s3 = inlined_call_operand.vmem [shape: f32[32,8], index: 3, kind: input, shape index: {}]
  %s4 = inlined_call_operand.vmem [shape: f32[1,8], index: 4, kind: input, shape index: {}]
  %s5 = inlined_call_operand.hbm [shape: f32[16,8], index: 5, kind: output, shape index: {}]
  %s6 = sld [smem:[#allocation0]]
  $region34: #{relation_type_inference.2} parent=0
    _
  %s8 = ssub.s32 1, %s6
  %s9 = scalar_select 0, %s8, %s6
  $region1: #{relation_type_inference.2} parent=0
    #allocation2 [shape = 'u8[8192]{0}', space=vmem, size = 0x2000, scoped, tag = 'input window, operand 0, single buffered']
    #allocation3 [shape = 's32[1]{0}', space=sflag, size = 0x4, scoped, tag = 'scoped memory for relation_type_inference.2']
    #allocation4 [shape = 's32[1]{0}', space=sflag, size = 0x4, scoped, tag = 'scoped memory for relation_type_inference.2']
    #allocation5 [shape = 'u8[8192]{0}', space=vmem, size = 0x2000, scoped, tag = 'output window, operand 0, single buffered']
    %10 = vsyncpa [#allocation3], 0
    %11 = vsyncpa [#allocation4], 0
    // Predicated region
    $region2: #{relation_type_inference.2} parent=1 // pred_check
      _
    $region3: #{relation_type_inference.2} parent=1 // pred_check_branch
      %13 = sbr.rel (0) target = $region5
    $region4: #{relation_type_inference.2} parent=1 // pred_region
      %15 = vsyncadd [#allocation3], 0
      %s16 = sshll.u32 %s0, 4
      %s17 = int_to_ptr.hbm [resolvable:$true] %s16
      %s18 = sshll.u32 [#allocation2], 4
      %s19 = int_to_ptr.vmem [resolvable:$true] %s18
      %24 = dma.hbm_to_vmem [thread:$0]  %s17, 256, %s19, [#allocation3], 128, 128, 8
    $region5: #{relation_type_inference.2} parent=1 // pred_fallthru
      _
    // Predicated region
    $region6: #{relation_type_inference.2} parent=1 // pred_check
      _
    $region7: #{relation_type_inference.2} parent=1 // pred_check_branch
      %26 = sbr.rel (0) target = $region9
    $region8: #{relation_type_inference.2} parent=1 // pred_region
      _
    $region9: #{relation_type_inference.2} parent=1 // pred_fallthru
      _
    // Predicated region
    $region10: #{relation_type_inference.2} parent=1 // pred_check
      _
    $region11: #{relation_type_inference.2} parent=1 // pred_check_branch
      %28 = sbr.rel (0) target = $region13
    $region12: #{relation_type_inference.2} parent=1 // pred_region
      _
    $region13: #{relation_type_inference.2} parent=1 // pred_fallthru
      _
    // Predicated region
    $region14: #{relation_type_inference.2} parent=1 // pred_check
      _
    $region15: #{relation_type_inference.2} parent=1 // pred_check_branch
      %30 = sbr.rel (0) target = $region17
    $region16: #{relation_type_inference.2} parent=1 // pred_region
      _
    $region17: #{relation_type_inference.2} parent=1 // pred_fallthru
      _
    // Predicated region
    $region18: #{relation_type_inference.2} parent=1 // pred_check
      _
    $region19: #{relation_type_inference.2} parent=1 // pred_check_branch
      %32 = sbr.rel (0) target = $region21
    $region20: #{relation_type_inference.2} parent=1 // pred_region
      _
    $region21: #{relation_type_inference.2} parent=1 // pred_fallthru
      _
    // Predicated region
    $region22: #{relation_type_inference.2} parent=1 // pred_check
      _
    $region23: #{relation_type_inference.2} parent=1 // pred_check_branch
      %34 = sbr.rel (0) target = $region25
    $region24: #{relation_type_inference.2} parent=1 // pred_region
      %36 = dma.done [#allocation3], 256
    $region25: #{relation_type_inference.2} parent=1 // pred_fallthru
      _
    %v37 = vld [vmem:[#allocation2] sm:$0xff]
    %v38 = vld [vmem:[#allocation2 + $0x8] sm:$0xff]
    %v39 = vld [vmem:[%s1] sm:$0xff]
    %v40 = vld [vmem:[%s1 + $0x8] sm:$0xff]
    %v41 = vld [vmem:[%s1 + $0x10] sm:$0xff]
    %v42 = vld [vmem:[%s1 + $0x18] sm:$0xff]
    %v43 = vld [vmem:[%s2] sm:$0x1]
    %v45 = vperm.slane %v43, 0
    %vm47 = vcmask 261120
    %v49 = vsel %vm47, %v37, 0
    %v52 = vsel %vm47, %v38, 0
    %54 = vmatpush.msra.mxu0 0.0
    %55 = vmatpush.msra.mxu0 0.0
    %56 = vmatpush.msra.mxu0 0.0
    %57 = vmatpush.msra.mxu0 0.0
    %58 = vmatpush.msra.mxu0 0.0
    %59 = vmatpush.msra.mxu0 0.0
    %60 = vmatpush.msra.mxu0 0.0
    %61 = vmatpush.msra.mxu0 0.0
    %62 = vmatpush.msra.mxu0 0.0
    %63 = vmatpush.msra.mxu0 0.0
    %64 = vmatpush.msra.mxu0 0.0
    %65 = vmatpush.msra.mxu0 0.0
    %v66 = vand.u32 %v42, 4294901760
    %67 = vmatpush.msra.mxu0 %v66
    %v68 = vand.u32 %v41, 4294901760
    %69 = vmatpush.msra.mxu0 %v68
    %v70 = vand.u32 %v40, 4294901760
    %71 = vmatpush.msra.mxu0 %v70
    %v72 = vand.u32 %v39, 4294901760
    %73 = vmatpush.msra.mxu0 %v72
    %v74 = vand.u32 %v49, 4294901760
    %v75 = vsub.f32 %v49, %v74
    %v76 = vand.u32 %v75, 4294901760
    %v77 = vsub.f32 %v75, %v76
    %v78 = vand.u32 %v77, 4294901760
    %79 = vmatmul.f32.gmra.mxu0 %v78
    %v80 = vpop.f32.mrf.mxu0
    %v81 = vadd.f32 %v45, %v80
    %v82 = vand.u32 %v52, 4294901760
    %v83 = vsub.f32 %v52, %v82
    %v84 = vand.u32 %v83, 4294901760
    %v85 = vsub.f32 %v83, %v84
    %v86 = vand.u32 %v85, 4294901760
    %87 = vmatmul.f32.gmra.mxu0 %v86
    %v88 = vpop.f32.mrf.mxu0
    %v89 = vadd.f32 %v45, %v88
    %90 = vdwg.mxu0
    %91 = vmatpush.msra.mxu0 0.0
    %92 = vmatpush.msra.mxu0 0.0
    %93 = vmatpush.msra.mxu0 0.0
    %94 = vmatpush.msra.mxu0 0.0
    %95 = vmatpush.msra.mxu0 0.0
    %96 = vmatpush.msra.mxu0 0.0
    %97 = vmatpush.msra.mxu0 0.0
    %98 = vmatpush.msra.mxu0 0.0
    %99 = vmatpush.msra.mxu0 0.0
    %100 = vmatpush.msra.mxu0 0.0
    %101 = vmatpush.msra.mxu0 0.0
    %102 = vmatpush.msra.mxu0 0.0
    %v103 = vand.u32 %v42, 4294901760
    %v104 = vsub.f32 %v42, %v103
    %v105 = vand.u32 %v104, 4294901760
    %v106 = vsub.f32 %v104, %v105
    %v107 = vand.u32 %v106, 4294901760
    %108 = vmatpush.msra.mxu0 %v107
    %v109 = vand.u32 %v41, 4294901760
    %v110 = vsub.f32 %v41, %v109
    %v111 = vand.u32 %v110, 4294901760
    %v112 = vsub.f32 %v110, %v111
    %v113 = vand.u32 %v112, 4294901760
    %114 = vmatpush.msra.mxu0 %v113
    %v115 = vand.u32 %v40, 4294901760
    %v116 = vsub.f32 %v40, %v115
    %v117 = vand.u32 %v116, 4294901760
    %v118 = vsub.f32 %v116, %v117
    %v119 = vand.u32 %v118, 4294901760
    %120 = vmatpush.msra.mxu0 %v119
    %v121 = vand.u32 %v39, 4294901760
    %v122 = vsub.f32 %v39, %v121
    %v123 = vand.u32 %v122, 4294901760
    %v124 = vsub.f32 %v122, %v123
    %v125 = vand.u32 %v124, 4294901760
    %126 = vmatpush.msra.mxu0 %v125
    %v127 = vand.u32 %v49, 4294901760
    %128 = vmatmul.f32.gmra.mxu0 %v127
    %v129 = vpop.f32.mrf.mxu0
    %v130 = vadd.f32 %v81, %v129
    %v131 = vand.u32 %v52, 4294901760
    %132 = vmatmul.f32.gmra.mxu0 %v131
    %v133 = vpop.f32.mrf.mxu0
    %v134 = vadd.f32 %v89, %v133
    %135 = vdwg.mxu0
    %136 = vmatpush.msra.mxu0 0.0
    %137 = vmatpush.msra.mxu0 0.0
    %138 = vmatpush.msra.mxu0 0.0
    %139 = vmatpush.msra.mxu0 0.0
    %140 = vmatpush.msra.mxu0 0.0
    %141 = vmatpush.msra.mxu0 0.0
    %142 = vmatpush.msra.mxu0 0.0
    %143 = vmatpush.msra.mxu0 0.0
    %144 = vmatpush.msra.mxu0 0.0
    %145 = vmatpush.msra.mxu0 0.0
    %146 = vmatpush.msra.mxu0 0.0
    %147 = vmatpush.msra.mxu0 0.0
    %v148 = vand.u32 %v42, 4294901760
    %v149 = vsub.f32 %v42, %v148
    %150 = vmatpush.msra.mxu0 %v149
    %v151 = vand.u32 %v41, 4294901760
    %v152 = vsub.f32 %v41, %v151
    %153 = vmatpush.msra.mxu0 %v152
    %v154 = vand.u32 %v40, 4294901760
    %v155 = vsub.f32 %v40, %v154
    %156 = vmatpush.msra.mxu0 %v155
    %v157 = vand.u32 %v39, 4294901760
    %v158 = vsub.f32 %v39, %v157
    %159 = vmatpush.msra.mxu0 %v158
    %v160 = vand.u32 %v49, 4294901760
    %v161 = vsub.f32 %v49, %v160
    %162 = vmatmul.f32.gmra.mxu0 %v161
    %v163 = vpop.f32.mrf.mxu0
    %v164 = vadd.f32 %v130, %v163
    %v165 = vand.u32 %v52, 4294901760
    %v166 = vsub.f32 %v52, %v165
    %167 = vmatmul.f32.gmra.mxu0 %v166
    %v168 = vpop.f32.mrf.mxu0
    %v169 = vadd.f32 %v134, %v168
    %170 = vdwg.mxu0
    %171 = vmatpush.msra.mxu0 0.0
    %172 = vmatpush.msra.mxu0 0.0
    %173 = vmatpush.msra.mxu0 0.0
    %174 = vmatpush.msra.mxu0 0.0
    %175 = vmatpush.msra.mxu0 0.0
    %176 = vmatpush.msra.mxu0 0.0
    %177 = vmatpush.msra.mxu0 0.0
    %178 = vmatpush.msra.mxu0 0.0
    %179 = vmatpush.msra.mxu0 0.0
    %180 = vmatpush.msra.mxu0 0.0
    %181 = vmatpush.msra.mxu0 0.0
    %182 = vmatpush.msra.mxu0 0.0
    %v183 = vand.u32 %v42, 4294901760
    %184 = vmatpush.msra.mxu0 %v183
    %v185 = vand.u32 %v41, 4294901760
    %186 = vmatpush.msra.mxu0 %v185
    %v187 = vand.u32 %v40, 4294901760
    %188 = vmatpush.msra.mxu0 %v187
    %v189 = vand.u32 %v39, 4294901760
    %190 = vmatpush.msra.mxu0 %v189
    %v191 = vand.u32 %v49, 4294901760
    %v192 = vsub.f32 %v49, %v191
    %v193 = vand.u32 %v192, 4294901760
    %194 = vmatmul.f32.gmra.mxu0 %v193
    %v195 = vpop.f32.mrf.mxu0
    %v196 = vadd.f32 %v164, %v195
    %v197 = vand.u32 %v52, 4294901760
    %v198 = vsub.f32 %v52, %v197
    %v199 = vand.u32 %v198, 4294901760
    %200 = vmatmul.f32.gmra.mxu0 %v199
    %v201 = vpop.f32.mrf.mxu0
    %v202 = vadd.f32 %v169, %v201
    %203 = vdwg.mxu0
    %204 = vmatpush.msra.mxu0 0.0
    %205 = vmatpush.msra.mxu0 0.0
    %206 = vmatpush.msra.mxu0 0.0
    %207 = vmatpush.msra.mxu0 0.0
    %208 = vmatpush.msra.mxu0 0.0
    %209 = vmatpush.msra.mxu0 0.0
    %210 = vmatpush.msra.mxu0 0.0
    %211 = vmatpush.msra.mxu0 0.0
    %212 = vmatpush.msra.mxu0 0.0
    %213 = vmatpush.msra.mxu0 0.0
    %214 = vmatpush.msra.mxu0 0.0
    %215 = vmatpush.msra.mxu0 0.0
    %v216 = vand.u32 %v42, 4294901760
    %v217 = vsub.f32 %v42, %v216
    %v218 = vand.u32 %v217, 4294901760
    %219 = vmatpush.msra.mxu0 %v218
    %v220 = vand.u32 %v41, 4294901760
    %v221 = vsub.f32 %v41, %v220
    %v222 = vand.u32 %v221, 4294901760
    %223 = vmatpush.msra.mxu0 %v222
    %v224 = vand.u32 %v40, 4294901760
    %v225 = vsub.f32 %v40, %v224
    %v226 = vand.u32 %v225, 4294901760
    %227 = vmatpush.msra.mxu0 %v226
    %v228 = vand.u32 %v39, 4294901760
    %v229 = vsub.f32 %v39, %v228
    %v230 = vand.u32 %v229, 4294901760
    %231 = vmatpush.msra.mxu0 %v230
    %v232 = vand.u32 %v49, 4294901760
    %233 = vmatmul.f32.gmra.mxu0 %v232
    %v234 = vpop.f32.mrf.mxu0
    %v235 = vadd.f32 %v196, %v234
    %v236 = vand.u32 %v52, 4294901760
    %237 = vmatmul.f32.gmra.mxu0 %v236
    %v238 = vpop.f32.mrf.mxu0
    %v239 = vadd.f32 %v202, %v238
    %240 = vdwg.mxu0
    %241 = vmatpush.msra.mxu0 0.0
    %242 = vmatpush.msra.mxu0 0.0
    %243 = vmatpush.msra.mxu0 0.0
    %244 = vmatpush.msra.mxu0 0.0
    %245 = vmatpush.msra.mxu0 0.0
    %246 = vmatpush.msra.mxu0 0.0
    %247 = vmatpush.msra.mxu0 0.0
    %248 = vmatpush.msra.mxu0 0.0
    %249 = vmatpush.msra.mxu0 0.0
    %250 = vmatpush.msra.mxu0 0.0
    %251 = vmatpush.msra.mxu0 0.0
    %252 = vmatpush.msra.mxu0 0.0
    %v253 = vand.u32 %v42, 4294901760
    %254 = vmatpush.msra.mxu0 %v253
    %v255 = vand.u32 %v41, 4294901760
    %256 = vmatpush.msra.mxu0 %v255
    %v257 = vand.u32 %v40, 4294901760
    %258 = vmatpush.msra.mxu0 %v257
    %v259 = vand.u32 %v39, 4294901760
    %260 = vmatpush.msra.mxu0 %v259
    %v261 = vand.u32 %v49, 4294901760
    %262 = vmatmul.f32.gmra.mxu0 %v261
    %v263 = vpop.f32.mrf.mxu0
    %v264 = vadd.f32 %v235, %v263
    %v265 = vand.u32 %v52, 4294901760
    %266 = vmatmul.f32.gmra.mxu0 %v265
    %v267 = vpop.f32.mrf.mxu0
    %v268 = vadd.f32 %v239, %v267
    %269 = vdwg.mxu0
    %vm270 = vcmp.gt.f32.partialorder %v264, 0.0
    %vm271 = vcmp.gt.f32.partialorder %v268, 0.0
    %v272 = vmul.f32 %v264, 0.01
    %v273 = vmul.f32 %v268, 0.01
    %v274 = vsel %vm270, %v264, %v272
    %v275 = vsel %vm271, %v268, %v273
    %v276 = vld [vmem:[%s3] sm:$0xff]
    %v277 = vld [vmem:[%s3 + $0x8] sm:$0xff]
    %v278 = vld [vmem:[%s3 + $0x10] sm:$0xff]
    %v279 = vld [vmem:[%s3 + $0x18] sm:$0xff]
    %v280 = vld [vmem:[%s4] sm:$0x1]
    %v282 = vperm.slane %v280, 0
    %v285 = vsel %vm47, %v274, 0
    %v288 = vsel %vm47, %v275, 0
    %290 = vmatpush.msra.mxu0 0.0
    %291 = vmatpush.msra.mxu0 0.0
    %292 = vmatpush.msra.mxu0 0.0
    %293 = vmatpush.msra.mxu0 0.0
    %294 = vmatpush.msra.mxu0 0.0
    %295 = vmatpush.msra.mxu0 0.0
    %296 = vmatpush.msra.mxu0 0.0
    %297 = vmatpush.msra.mxu0 0.0
    %298 = vmatpush.msra.mxu0 0.0
    %299 = vmatpush.msra.mxu0 0.0
    %300 = vmatpush.msra.mxu0 0.0
    %301 = vmatpush.msra.mxu0 0.0
    %v302 = vand.u32 %v279, 4294901760
    %303 = vmatpush.msra.mxu0 %v302
    %v304 = vand.u32 %v278, 4294901760
    %305 = vmatpush.msra.mxu0 %v304
    %v306 = vand.u32 %v277, 4294901760
    %307 = vmatpush.msra.mxu0 %v306
    %v308 = vand.u32 %v276, 4294901760
    %309 = vmatpush.msra.mxu0 %v308
    %v310 = vand.u32 %v285, 4294901760
    %v311 = vsub.f32 %v285, %v310
    %v312 = vand.u32 %v311, 4294901760
    %v313 = vsub.f32 %v311, %v312
    %v314 = vand.u32 %v313, 4294901760
    %315 = vmatmul.f32.gmra.mxu0 %v314
    %v316 = vpop.f32.mrf.mxu0
    %v317 = vadd.f32 %v282, %v316
    %v318 = vand.u32 %v288, 4294901760
    %v319 = vsub.f32 %v288, %v318
    %v320 = vand.u32 %v319, 4294901760
    %v321 = vsub.f32 %v319, %v320
    %v322 = vand.u32 %v321, 4294901760
    %323 = vmatmul.f32.gmra.mxu0 %v322
    %v324 = vpop.f32.mrf.mxu0
    %v325 = vadd.f32 %v282, %v324
    %326 = vdwg.mxu0
    %327 = vmatpush.msra.mxu0 0.0
    %328 = vmatpush.msra.mxu0 0.0
    %329 = vmatpush.msra.mxu0 0.0
    %330 = vmatpush.msra.mxu0 0.0
    %331 = vmatpush.msra.mxu0 0.0
    %332 = vmatpush.msra.mxu0 0.0
    %333 = vmatpush.msra.mxu0 0.0
    %334 = vmatpush.msra.mxu0 0.0
    %335 = vmatpush.msra.mxu0 0.0
    %336 = vmatpush.msra.mxu0 0.0
    %337 = vmatpush.msra.mxu0 0.0
    %338 = vmatpush.msra.mxu0 0.0
    %v339 = vand.u32 %v279, 4294901760
    %v340 = vsub.f32 %v279, %v339
    %v341 = vand.u32 %v340, 4294901760
    %v342 = vsub.f32 %v340, %v341
    %v343 = vand.u32 %v342, 4294901760
    %344 = vmatpush.msra.mxu0 %v343
    %v345 = vand.u32 %v278, 4294901760
    %v346 = vsub.f32 %v278, %v345
    %v347 = vand.u32 %v346, 4294901760
    %v348 = vsub.f32 %v346, %v347
    %v349 = vand.u32 %v348, 4294901760
    %350 = vmatpush.msra.mxu0 %v349
    %v351 = vand.u32 %v277, 4294901760
    %v352 = vsub.f32 %v277, %v351
    %v353 = vand.u32 %v352, 4294901760
    %v354 = vsub.f32 %v352, %v353
    %v355 = vand.u32 %v354, 4294901760
    %356 = vmatpush.msra.mxu0 %v355
    %v357 = vand.u32 %v276, 4294901760
    %v358 = vsub.f32 %v276, %v357
    %v359 = vand.u32 %v358, 4294901760
    %v360 = vsub.f32 %v358, %v359
    %v361 = vand.u32 %v360, 4294901760
    %362 = vmatpush.msra.mxu0 %v361
    %v363 = vand.u32 %v285, 4294901760
    %364 = vmatmul.f32.gmra.mxu0 %v363
    %v365 = vpop.f32.mrf.mxu0
    %v366 = vadd.f32 %v317, %v365
    %v367 = vand.u32 %v288, 4294901760
    %368 = vmatmul.f32.gmra.mxu0 %v367
    %v369 = vpop.f32.mrf.mxu0
    %v370 = vadd.f32 %v325, %v369
    %371 = vdwg.mxu0
    %372 = vmatpush.msra.mxu0 0.0
    %373 = vmatpush.msra.mxu0 0.0
    %374 = vmatpush.msra.mxu0 0.0
    %375 = vmatpush.msra.mxu0 0.0
    %376 = vmatpush.msra.mxu0 0.0
    %377 = vmatpush.msra.mxu0 0.0
    %378 = vmatpush.msra.mxu0 0.0
    %379 = vmatpush.msra.mxu0 0.0
    %380 = vmatpush.msra.mxu0 0.0
    %381 = vmatpush.msra.mxu0 0.0
    %382 = vmatpush.msra.mxu0 0.0
    %383 = vmatpush.msra.mxu0 0.0
    %v384 = vand.u32 %v279, 4294901760
    %v385 = vsub.f32 %v279, %v384
    %386 = vmatpush.msra.mxu0 %v385
    %v387 = vand.u32 %v278, 4294901760
    %v388 = vsub.f32 %v278, %v387
    %389 = vmatpush.msra.mxu0 %v388
    %v390 = vand.u32 %v277, 4294901760
    %v391 = vsub.f32 %v277, %v390
    %392 = vmatpush.msra.mxu0 %v391
    %v393 = vand.u32 %v276, 4294901760
    %v394 = vsub.f32 %v276, %v393
    %395 = vmatpush.msra.mxu0 %v394
    %v396 = vand.u32 %v285, 4294901760
    %v397 = vsub.f32 %v285, %v396
    %398 = vmatmul.f32.gmra.mxu0 %v397
    %v399 = vpop.f32.mrf.mxu0
    %v400 = vadd.f32 %v366, %v399
    %v401 = vand.u32 %v288, 4294901760
    %v402 = vsub.f32 %v288, %v401
    %403 = vmatmul.f32.gmra.mxu0 %v402
    %v404 = vpop.f32.mrf.mxu0
    %v405 = vadd.f32 %v370, %v404
    %406 = vdwg.mxu0
    %407 = vmatpush.msra.mxu0 0.0
    %408 = vmatpush.msra.mxu0 0.0
    %409 = vmatpush.msra.mxu0 0.0
    %410 = vmatpush.msra.mxu0 0.0
    %411 = vmatpush.msra.mxu0 0.0
    %412 = vmatpush.msra.mxu0 0.0
    %413 = vmatpush.msra.mxu0 0.0
    %414 = vmatpush.msra.mxu0 0.0
    %415 = vmatpush.msra.mxu0 0.0
    %416 = vmatpush.msra.mxu0 0.0
    %417 = vmatpush.msra.mxu0 0.0
    %418 = vmatpush.msra.mxu0 0.0
    %v419 = vand.u32 %v279, 4294901760
    %420 = vmatpush.msra.mxu0 %v419
    %v421 = vand.u32 %v278, 4294901760
    %422 = vmatpush.msra.mxu0 %v421
    %v423 = vand.u32 %v277, 4294901760
    %424 = vmatpush.msra.mxu0 %v423
    %v425 = vand.u32 %v276, 4294901760
    %426 = vmatpush.msra.mxu0 %v425
    %v427 = vand.u32 %v285, 4294901760
    %v428 = vsub.f32 %v285, %v427
    %v429 = vand.u32 %v428, 4294901760
    %430 = vmatmul.f32.gmra.mxu0 %v429
    %v431 = vpop.f32.mrf.mxu0
    %v432 = vadd.f32 %v400, %v431
    %v433 = vand.u32 %v288, 4294901760
    %v434 = vsub.f32 %v288, %v433
    %v435 = vand.u32 %v434, 4294901760
    %436 = vmatmul.f32.gmra.mxu0 %v435
    %v437 = vpop.f32.mrf.mxu0
    %v438 = vadd.f32 %v405, %v437
    %439 = vdwg.mxu0
    %440 = vmatpush.msra.mxu0 0.0
    %441 = vmatpush.msra.mxu0 0.0
    %442 = vmatpush.msra.mxu0 0.0
    %443 = vmatpush.msra.mxu0 0.0
    %444 = vmatpush.msra.mxu0 0.0
    %445 = vmatpush.msra.mxu0 0.0
    %446 = vmatpush.msra.mxu0 0.0
    %447 = vmatpush.msra.mxu0 0.0
    %448 = vmatpush.msra.mxu0 0.0
    %449 = vmatpush.msra.mxu0 0.0
    %450 = vmatpush.msra.mxu0 0.0
    %451 = vmatpush.msra.mxu0 0.0
    %v452 = vand.u32 %v279, 4294901760
    %v453 = vsub.f32 %v279, %v452
    %v454 = vand.u32 %v453, 4294901760
    %455 = vmatpush.msra.mxu0 %v454
    %v456 = vand.u32 %v278, 4294901760
    %v457 = vsub.f32 %v278, %v456
    %v458 = vand.u32 %v457, 4294901760
    %459 = vmatpush.msra.mxu0 %v458
    %v460 = vand.u32 %v277, 4294901760
    %v461 = vsub.f32 %v277, %v460
    %v462 = vand.u32 %v461, 4294901760
    %463 = vmatpush.msra.mxu0 %v462
    %v464 = vand.u32 %v276, 4294901760
    %v465 = vsub.f32 %v276, %v464
    %v466 = vand.u32 %v465, 4294901760
    %467 = vmatpush.msra.mxu0 %v466
    %v468 = vand.u32 %v285, 4294901760
    %469 = vmatmul.f32.gmra.mxu0 %v468
    %v470 = vpop.f32.mrf.mxu0
    %v471 = vadd.f32 %v432, %v470
    %v472 = vand.u32 %v288, 4294901760
    %473 = vmatmul.f32.gmra.mxu0 %v472
    %v474 = vpop.f32.mrf.mxu0
    %v475 = vadd.f32 %v438, %v474
    %476 = vdwg.mxu0
    %477 = vmatpush.msra.mxu0 0.0
    %478 = vmatpush.msra.mxu0 0.0
    %479 = vmatpush.msra.mxu0 0.0
    %480 = vmatpush.msra.mxu0 0.0
    %481 = vmatpush.msra.mxu0 0.0
    %482 = vmatpush.msra.mxu0 0.0
    %483 = vmatpush.msra.mxu0 0.0
    %484 = vmatpush.msra.mxu0 0.0
    %485 = vmatpush.msra.mxu0 0.0
    %486 = vmatpush.msra.mxu0 0.0
    %487 = vmatpush.msra.mxu0 0.0
    %488 = vmatpush.msra.mxu0 0.0
    %v489 = vand.u32 %v279, 4294901760
    %490 = vmatpush.msra.mxu0 %v489
    %v491 = vand.u32 %v278, 4294901760
    %492 = vmatpush.msra.mxu0 %v491
    %v493 = vand.u32 %v277, 4294901760
    %494 = vmatpush.msra.mxu0 %v493
    %v495 = vand.u32 %v276, 4294901760
    %496 = vmatpush.msra.mxu0 %v495
    %v497 = vand.u32 %v285, 4294901760
    %498 = vmatmul.f32.gmra.mxu0 %v497
    %v499 = vpop.f32.mrf.mxu0
    %v500 = vadd.f32 %v471, %v499
    %v501 = vand.u32 %v288, 4294901760
    %502 = vmatmul.f32.gmra.mxu0 %v501
    %v503 = vpop.f32.mrf.mxu0
    %v504 = vadd.f32 %v475, %v503
    %505 = vdwg.mxu0
    %vm506 = vcmask 64512
    %507 = vst.msk [vmem:[#allocation5] sm:$0xff] %vm506, %v500
    %508 = vst.msk [vmem:[#allocation5 + $0x8] sm:$0xff] %vm506, %v504
    // Predicated region
    $region26: #{relation_type_inference.2} parent=1 // pred_check
      _
    $region27: #{relation_type_inference.2} parent=1 // pred_check_branch
      %510 = sbr.rel (0) target = $region29
    $region28: #{relation_type_inference.2} parent=1 // pred_region
      %512 = vsyncadd [#allocation4], 0
      %s513 = sshll.u32 [#allocation5], 4
      %s514 = int_to_ptr.vmem [resolvable:$true] %s513
      %s515 = sshll.u32 %s5, 4
      %s516 = int_to_ptr.hbm [resolvable:$true] %s515
      %521 = dma.vmem_to_hbm [thread:$0]  %s514, 256, %s516, [#allocation4], 128, 128, 8
    $region29: #{relation_type_inference.2} parent=1 // pred_fallthru
      _
    // Predicated region
    $region30: #{relation_type_inference.2} parent=1 // pred_check
      _
    $region31: #{relation_type_inference.2} parent=1 // pred_check_branch
      %523 = sbr.rel (0) target = $region33
    $region32: #{relation_type_inference.2} parent=1 // pred_region
      %525 = dma.done [#allocation4], 256
    $region33: #{relation_type_inference.2} parent=1 // pred_fallthru
      _
    %526 = vsyncpa [#allocation3], 1
    %527 = vsyncpa [#allocation4], 1

</llo_original>
